<compile_context>
chip_gen: v5e
topology: v5e:2x2
jax: 0.10.0
libtpu: 0.0.40
codegen_flags: <defaults>
</compile_context>

<pallas_src>
import jax
import jax.numpy as jnp
from jax.experimental import pallas as pl
from jax.experimental.pallas import tpu as pltpu


# ----------------------------------------------------------------------------
# Small helpers
# ----------------------------------------------------------------------------
def _round_up(x, m):
    return ((x + m - 1) // m) * m


def _pad2d(a, rows, cols):
    r, c = a.shape
    return jnp.pad(a, ((0, rows - r), (0, cols - c)))


def _choose_tile(total, desired, align):
    """Pick a tile (multiple of `align`) that evenly divides round_up(total, align)."""
    total_a = _round_up(max(int(total), 1), align)
    t = min(_round_up(int(desired), align), total_a)
    while total_a % t:
        t -= align
    return t, total_a


def _mxu_lane_align():
    """256 on v6e/v7x (2x256x256 MXU); 128 on v5e/older and as a safe fallback."""
    try:
        kind = jax.devices()[0].device_kind.lower()
    except Exception:
        return 128
    return 256 if any(tag in kind for tag in ("v6", "v7", "7x")) else 128


def _vmem_limit_bytes(request_bytes):
    """Generation-aware VMEM budget: never ask for more than ~75% of physical VMEM."""
    cap = 64 << 20  # conservative fallback (v7x per-TensorCore VMEM)
    try:
        cap = int(pltpu.get_tpu_info().vmem_capacity_bytes)
    except Exception:
        pass
    return int(min(max(int(request_bytes) + (8 << 20), 32 << 20), int(cap * 0.75)))


# ----------------------------------------------------------------------------
# Kernels
# ----------------------------------------------------------------------------
def _enc_dec_kernel(e_ref, w1_ref, b1_ref, w2_ref, b2_ref, dec_ref):
    """dec = ReLU(ReLU(e @ w1 + b1) @ w2 + b2) for one token tile.

    e_ref  : [TM, Ep]  gathered embeddings (bf16)
    w1_ref : [Ep, Hp]  encoder weight (bf16)     b1_ref: [1, Hp] (f32)
    w2_ref : [Hp, Ep]  decoder weight (bf16)     b2_ref: [1, Ep] (f32)
    dec_ref: [TM, Ep]  decoded activations (bf16)
    """
    cd = dec_ref.dtype
    h = jnp.dot(e_ref[...], w1_ref[...],
                preferred_element_type=jnp.float32) + b1_ref[...]
    h = jnp.maximum(h, 0.0)
    d = jnp.dot(h.astype(cd), w2_ref[...],
                preferred_element_type=jnp.float32) + b2_ref[...]
    d = jnp.maximum(d, 0.0)
    dec_ref[...] = d.astype(cd)


def _output_kernel(dec_ref, w3_ref, b3_ref, out_ref):
    """logits tile = dec @ w3_tile + b3_tile.

    dec_ref: [TM, Ep]        (bf16, varies with the inner/token grid axis)
    w3_ref : [1, Ep, TV]     block-major w3 tile (bf16, varies with outer axis)
    b3_ref : [1, 1, TV]      (f32)
    out_ref: [TM, TV]        (f32)
    """
    logits = jnp.dot(dec_ref[...], w3_ref[0],
                     preferred_element_type=jnp.float32) + b3_ref[0]
    out_ref[...] = logits.astype(out_ref.dtype)


# ----------------------------------------------------------------------------
# Parameter preparation (run ONCE, outside the hot path)
# ----------------------------------------------------------------------------
def prepare_params(params, *, tile_m=512, tile_v=1024, compute_dtype=jnp.bfloat16):
    """Pad/cast parameters and pre-layout w3 in block-major form."""
    emb, w1, b1, w2, b2, w3, b3 = params
    V, E = emb.shape
    H = w1.shape[1]
    cd = jnp.dtype(compute_dtype)

    align = _mxu_lane_align()
    E_pad = _round_up(E, align)
    H_pad = _round_up(H, align)
    TV, V_pad = _choose_tile(V, tile_v, align)
    nV = V_pad // TV

    emb_cd = _pad2d(emb.astype(cd), V, E_pad)          # rows gathered, so V unpadded
    w1_p = _pad2d(w1.astype(cd), E_pad, H_pad)
    b1_p = _pad2d(b1.reshape(1, -1).astype(jnp.float32), 1, H_pad)
    w2_p = _pad2d(w2.astype(cd), H_pad, E_pad)
    b2_p = _pad2d(b2.reshape(1, -1).astype(jnp.float32), 1, E_pad)
    w3_p = _pad2d(w3.astype(cd), E_pad, V_pad)
    b3_p = _pad2d(b3.reshape(1, -1).astype(jnp.float32), 1, V_pad)

    # Block-major layout: each vocab tile of the dominant streamed operand is a
    # contiguous HBM region -> full-bandwidth DMA instead of strided row reads.
    w3_bm = w3_p.reshape(E_pad, nV, TV).transpose(1, 0, 2)   # (nV, E_pad, TV)
    b3_bm = b3_p.reshape(1, nV, TV).transpose(1, 0, 2)       # (nV, 1, TV)

    return dict(emb=emb_cd, w1=w1_p, b1=b1_p, w2=w2_p, b2=b2_p,
                w3=w3_bm, b3=b3_bm,
                V=V, E=E, H=H, E_pad=E_pad, H_pad=H_pad,
                TV=TV, V_pad=V_pad, nV=nV, tile_m=int(tile_m), cd=cd)


# ----------------------------------------------------------------------------
# Forward pass
# ----------------------------------------------------------------------------
def rels_autoencoder_forward(x, prepared):
    """x: int token ids [B, S]. Returns logits [B, S, vocab_size] (float32)."""
    p = prepared
    cd = p["cd"]
    cb = cd.itemsize
    E_pad, H_pad = p["E_pad"], p["H_pad"]
    TV, V_pad, nV, V = p["TV"], p["V_pad"], p["nV"], p["V"]

    B, S = x.shape
    N = B * S
    TM, N_pad = _choose_tile(N, p["tile_m"], 8)
    nN = N_pad // TM

    # Embedding lookup: XLA row gather from the bf16, E-padded table.
    # TODO(synk): replace with an in-kernel scalar-prefetched-id DMA row gather
    # (memory_space=pl.ANY) so the [N, E] gathered array never round-trips HBM.
    ids = x.reshape(-1).astype(jnp.int32)
    e = jnp.take(p["emb"], ids, axis=0)                       # (N, E_pad) bf16
    e = jnp.pad(e, ((0, N_pad - N), (0, 0)))

    # ---- kernel 1: dec = ReLU(ReLU(e @ w1 + b1) @ w2 + b2), tiled over tokens
    k1_bytes = 2 * (2 * TM * E_pad * cb + E_pad * H_pad * cb
                    + H_pad * E_pad * cb + (H_pad + E_pad) * 4)
    dec = pl.pallas_call(
        _enc_dec_kernel,
        out_shape=jax.ShapeDtypeStruct((N_pad, E_pad), cd),
        grid=(nN,),
        in_specs=[
            pl.BlockSpec((TM, E_pad), lambda i: (i, 0)),      # gathered embeddings
            pl.BlockSpec((E_pad, H_pad), lambda i: (0, 0)),   # encoder W
            pl.BlockSpec((1, H_pad), lambda i: (0, 0)),       # encoder b
            pl.BlockSpec((H_pad, E_pad), lambda i: (0, 0)),   # decoder W
            pl.BlockSpec((1, E_pad), lambda i: (0, 0)),       # decoder b
        ],
        out_specs=pl.BlockSpec((TM, E_pad), lambda i: (i, 0)),
        compiler_params=pltpu.CompilerParams(
            dimension_semantics=("parallel",),
            vmem_limit_bytes=_vmem_limit_bytes(k1_bytes)),
    )(e, p["w1"], p["b1"], p["w2"], p["b2"])

    # ---- kernel 2: logits = dec @ w3 + b3.
    # Vocab axis is the OUTER grid axis -> each (contiguous, block-major) w3
    # tile is streamed from HBM exactly once and reused across all token tiles.
    # Both axes are independent -> "parallel" (v7x can split vocab across TCs).
    k2_bytes = 2 * (TM * E_pad * cb + E_pad * TV * cb + TV * 4 + TM * TV * 4)
    logits_pad = pl.pallas_call(
        _output_kernel,
        out_shape=jax.ShapeDtypeStruct((N_pad, V_pad), jnp.float32),
        grid=(nV, nN),
        in_specs=[
            pl.BlockSpec((TM, E_pad), lambda j, i: (i, 0)),       # dec tile
            pl.BlockSpec((1, E_pad, TV), lambda j, i: (j, 0, 0)),  # w3 tile (block-major)
            pl.BlockSpec((1, 1, TV), lambda j, i: (j, 0, 0)),      # b3 tile
        ],
        out_specs=pl.BlockSpec((TM, TV), lambda j, i: (i, j)),
        compiler_params=pltpu.CompilerParams(
            dimension_semantics=("parallel", "parallel"),
            vmem_limit_bytes=_vmem_limit_bytes(k2_bytes)),
    )(dec, p["w3"], p["b3"])

    # TM | N_pad and TV | V_pad by construction, so at realistic (128-aligned)
    # vocab sizes this slice is a no-op view; only tiny demo shapes pay a copy.
    return logits_pad[:N, :V].reshape(B, S, V)


# ----------------------------------------------------------------------------
# Init + pure-JAX reference
# ----------------------------------------------------------------------------
def init_params(key, vocab_size, embed_dim, hidden_dim):
    """Deterministic init matching the PyTorch module's parameter shapes.

    Linear weights are stored transposed (in_features, out_features) so the
    kernel uses plain `x @ W + b` (== PyTorch x @ W.T + b). All params f32.
    """
    ks = jax.random.split(key, 7)
    emb = jax.random.normal(ks[0], (vocab_size, embed_dim), jnp.float32)

    def linear(kw, kb, fan_in, fan_out):
        bound = 1.0 / jnp.sqrt(fan_in)
        w = jax.random.uniform(kw, (fan_in, fan_out), jnp.float32, -bound, bound)
        b = jax.random.uniform(kb, (1, fan_out), jnp.float32, -bound, bound)
        return w, b

    w1, b1 = linear(ks[1], ks[2], embed_dim, hidden_dim)    # encoder
    w2, b2 = linear(ks[3], ks[4], hidden_dim, embed_dim)    # decoder
    w3, b3 = linear(ks[5], ks[6], embed_dim, vocab_size)    # output_layer
    return (emb, w1, b1, w2, b2, w3, b3)


def reference_forward(x, params, compute_dtype=jnp.bfloat16):
    """Pure-JAX reference with the same dtype strategy as the kernel
    (bf16 weights/activations into each matmul, f32 accumulation & epilogue)."""
    emb, w1, b1, w2, b2, w3, b3 = params
    cd = jnp.dtype(compute_dtype)
    B, S = x.shape
    e = emb.astype(cd)[x.reshape(-1)]
    h = jnp.maximum(jnp.dot(e, w1.astype(cd),
                            preferred_element_type=jnp.float32) + b1, 0.0)
    d = jnp.maximum(jnp.dot(h.astype(cd), w2.astype(cd),
                            preferred_element_type=jnp.float32) + b2, 0.0)
    logits = jnp.dot(d.astype(cd), w3.astype(cd),
                     preferred_element_type=jnp.float32) + b3
    return logits.reshape(B, S, -1)


if __name__ == "__main__":
    vocab_size, embed_dim, hidden_dim = 32, 16, 32
    batch, seq = 2, 8

    key = jax.random.PRNGKey(0)
    k_tok, k_par = jax.random.split(key)
    params = init_params(k_par, vocab_size, embed_dim, hidden_dim)
    x = jax.random.randint(k_tok, (batch, seq), 0, vocab_size, dtype=jnp.int32)

    prepared = prepare_params(params)            # pad / cast ONCE, off the hot path
    out = rels_autoencoder_forward(x, prepared)
    out = jax.block_until_ready(out)

    ref = reference_forward(x, params)
    assert out.shape == (batch, seq, vocab_size)
    err = float(jnp.max(jnp.abs(out - ref)))
    assert jnp.allclose(out, ref, atol=1e-2, rtol=1e-2), err
    print("KERNEL_OK")
</pallas_src>

<mosaic_0001>
module attributes {stable_mosaic.version = 11 : i64} {
  func.func @_enc_dec_kernel(%arg0: i32, %arg1: memref<16x128xbf16, #tpu.memory_space<vmem>>, %arg2: memref<128x128xbf16, #tpu.memory_space<vmem>>, %arg3: memref<1x128xf32, #tpu.memory_space<vmem>>, %arg4: memref<128x128xbf16, #tpu.memory_space<vmem>>, %arg5: memref<1x128xf32, #tpu.memory_space<vmem>>, %arg6: memref<16x128xbf16, #tpu.memory_space<vmem>>) attributes {dimension_semantics = [#tpu.dimension_semantics<parallel>], iteration_bounds = array<i64: 1>, scalar_prefetch = 0 : i64, scratch_operands = 0 : i64, tpu.core_type = #tpu.core_type<tc>, window_params = [{transform_indices = @transform_0, window_bounds = array<i64: 16, 128>}, {pipeline_mode = #tpu.pipeline_mode<synchronous>, transform_indices = @transform_1, window_bounds = array<i64: 128, 128>}, {pipeline_mode = #tpu.pipeline_mode<synchronous>, transform_indices = @transform_2, window_bounds = array<i64: 1, 128>}, {pipeline_mode = #tpu.pipeline_mode<synchronous>, transform_indices = @transform_3, window_bounds = array<i64: 128, 128>}, {pipeline_mode = #tpu.pipeline_mode<synchronous>, transform_indices = @transform_4, window_bounds = array<i64: 1, 128>}, {transform_indices = @transform_5, window_bounds = array<i64: 16, 128>}]} {
    %c0 = arith.constant 0 : index
    %c0_0 = arith.constant 0 : index
    %0 = vector.load %arg1[%c0, %c0_0] : memref<16x128xbf16, #tpu.memory_space<vmem>>, vector<16x128xbf16>
    %c0_1 = arith.constant 0 : index
    %c0_2 = arith.constant 0 : index
    %1 = vector.load %arg2[%c0_1, %c0_2] : memref<128x128xbf16, #tpu.memory_space<vmem>>, vector<128x128xbf16>
    %cst = arith.constant dense<0.000000e+00> : vector<16x128xf32>
    %2 = tpu.matmul %0, %1, %cst {dimension_numbers = #tpu.dot_dimension_numbers<[1], [0], [0], [1], [0, 0, 1, 1], [], []>} : vector<16x128xbf16>, vector<128x128xbf16>, vector<16x128xf32> -> vector<16x128xf32>
    %c0_3 = arith.constant 0 : index
    %c0_4 = arith.constant 0 : index
    %3 = vector.load %arg3[%c0_3, %c0_4] : memref<1x128xf32, #tpu.memory_space<vmem>>, vector<1x128xf32>
    %4 = vector.broadcast %3 : vector<1x128xf32> to vector<16x128xf32>
    %5 = arith.addf %2, %4 : vector<16x128xf32>
    %cst_5 = arith.constant 0.000000e+00 : f32
    %6 = vector.broadcast %cst_5 : f32 to vector<16x128xf32>
    %7 = arith.maximumf %5, %6 : vector<16x128xf32>
    %8 = arith.truncf %7 : vector<16x128xf32> to vector<16x128xbf16>
    %c0_6 = arith.constant 0 : index
    %c0_7 = arith.constant 0 : index
    %9 = vector.load %arg4[%c0_6, %c0_7] : memref<128x128xbf16, #tpu.memory_space<vmem>>, vector<128x128xbf16>
    %cst_8 = arith.constant dense<0.000000e+00> : vector<16x128xf32>
    %10 = tpu.matmul %8, %9, %cst_8 {dimension_numbers = #tpu.dot_dimension_numbers<[1], [0], [0], [1], [0, 0, 1, 1], [], []>} : vector<16x128xbf16>, vector<128x128xbf16>, vector<16x128xf32> -> vector<16x128xf32>
    %c0_9 = arith.constant 0 : index
    %c0_10 = arith.constant 0 : index
    %11 = vector.load %arg5[%c0_9, %c0_10] : memref<1x128xf32, #tpu.memory_space<vmem>>, vector<1x128xf32>
    %12 = vector.broadcast %11 : vector<1x128xf32> to vector<16x128xf32>
    %13 = arith.addf %10, %12 : vector<16x128xf32>
    %cst_11 = arith.constant 0.000000e+00 : f32
    %14 = vector.broadcast %cst_11 : f32 to vector<16x128xf32>
    %15 = arith.maximumf %13, %14 : vector<16x128xf32>
    %16 = arith.truncf %15 : vector<16x128xf32> to vector<16x128xbf16>
    %c0_12 = arith.constant 0 : index
    %c0_13 = arith.constant 0 : index
    %17 = vector.load %arg6[%c0_12, %c0_13] : memref<16x128xbf16, #tpu.memory_space<vmem>>, vector<16x128xbf16>
    tpu.vector_store %arg6[%c0_12, %c0_13], %16 {strides = array<i32>} : memref<16x128xbf16, #tpu.memory_space<vmem>>, vector<16x128xbf16>,
    return
  }
  func.func @transform_0(%arg0: i32) -> (i32, i32) {
    %c0_i32 = arith.constant 0 : i32
    %c0_i32_0 = arith.constant 0 : i32
    return %arg0, %c0_i32 : i32, i32
  }
  func.func @transform_1(%arg0: i32) -> (i32, i32) {
    %c0_i32 = arith.constant 0 : i32
    %c0_i32_0 = arith.constant 0 : i32
    %c0_i32_1 = arith.constant 0 : i32
    return %c0_i32, %c0_i32_0 : i32, i32
  }
  func.func @transform_2(%arg0: i32) -> (i32, i32) {
    %c0_i32 = arith.constant 0 : i32
    %c0_i32_0 = arith.constant 0 : i32
    %c0_i32_1 = arith.constant 0 : i32
    return %c0_i32, %c0_i32_0 : i32, i32
  }
  func.func @transform_3(%arg0: i32) -> (i32, i32) {
    %c0_i32 = arith.constant 0 : i32
    %c0_i32_0 = arith.constant 0 : i32
    %c0_i32_1 = arith.constant 0 : i32
    return %c0_i32, %c0_i32_0 : i32, i32
  }
  func.func @transform_4(%arg0: i32) -> (i32, i32) {
    %c0_i32 = arith.constant 0 : i32
    %c0_i32_0 = arith.constant 0 : i32
    %c0_i32_1 = arith.constant 0 : i32
    return %c0_i32, %c0_i32_0 : i32, i32
  }
  func.func @transform_5(%arg0: i32) -> (i32, i32) {
    %c0_i32 = arith.constant 0 : i32
    %c0_i32_0 = arith.constant 0 : i32
    return %arg0, %c0_i32 : i32, i32
  }
}

</mosaic_0001>

<llo_original>
// kernel: tpu_custom_call.1
$region0: #{tpu_custom_call.1}
  #allocation0 [shape = 'u32[]', space=smem, size = 0x4, offset = 0x4, fixed_abs, tag = 'smem constant byte address 0x4 - core index']
  #allocation1 [shape = 'u32[72,128]{1,0:T(1,128)}', space=vmem, size = 0x9000, scoped, tag = 'internal scratch']
  %s0 = inlined_call_operand.hbm [shape: bf16[16,128], index: 0, kind: input, shape index: {}]
  %s1 = inlined_call_operand.hbm [shape: bf16[128,128], index: 1, kind: input, shape index: {}]
  %s2 = inlined_call_operand.vmem [shape: f32[1,128], index: 2, kind: input, shape index: {}]
  %s3 = inlined_call_operand.hbm [shape: bf16[128,128], index: 3, kind: input, shape index: {}]
  %s4 = inlined_call_operand.vmem [shape: f32[1,128], index: 4, kind: input, shape index: {}]
  %s5 = inlined_call_operand.hbm [shape: bf16[16,128], index: 5, kind: output, shape index: {}]
  %s6 = sld [smem:[#allocation0]]
  $region42: #{tpu_custom_call.1} parent=0
    _
  %s8 = ssub.s32 1, %s6
  %s9 = scalar_select 0, %s8, %s6
  $region1: #{tpu_custom_call.1} parent=0
    #allocation2 [shape = 'u8[4096]{0}', space=vmem, size = 0x1000, scoped, tag = 'input window, operand 0, single buffered']
    #allocation3 [shape = 's32[1]{0}', space=sflag, size = 0x4, scoped, tag = 'scoped memory for tpu_custom_call.1']
    #allocation4 [shape = 's32[1]{0}', space=sflag, size = 0x4, scoped, tag = 'scoped memory for tpu_custom_call.1']
    #allocation5 [shape = 'u8[32768]{0}', space=vmem, size = 0x8000, scoped, tag = 'input window, operand 1, single buffered']
    #allocation6 [shape = 's32[1]{0}', space=sflag, size = 0x4, scoped, tag = 'scoped memory for tpu_custom_call.1']
    #allocation7 [shape = 'u8[32768]{0}', space=vmem, size = 0x8000, scoped, tag = 'input window, operand 3, single buffered']
    #allocation8 [shape = 'u8[4096]{0}', space=vmem, size = 0x1000, scoped, tag = 'output window, operand 0, single buffered']
    %10 = vsyncpa [#allocation3], 0
    %11 = vsyncpa [#allocation6], 0
    %12 = vsyncpa [#allocation4], 0
    // Predicated region
    $region2: #{tpu_custom_call.1} parent=1 // pred_check
      _
    $region3: #{tpu_custom_call.1} parent=1 // pred_check_branch
      %14 = sbr.rel (0) target = $region5
    $region4: #{tpu_custom_call.1} parent=1 // pred_region
      %16 = vsyncadd [#allocation3], 0
      %s17 = sshll.u32 %s0, 4
      %s18 = int_to_ptr.hbm [resolvable:$true] %s17
      %s19 = sshll.u32 [#allocation2], 4
      %s20 = int_to_ptr.vmem [resolvable:$true] %s19
      %25 = dma.hbm_to_vmem [thread:$0]  %s18, 128, %s20, [#allocation3], 64, 64, 4
    $region5: #{tpu_custom_call.1} parent=1 // pred_fallthru
      _
    // Predicated region
    $region6: #{tpu_custom_call.1} parent=1 // pred_check
      _
    $region7: #{tpu_custom_call.1} parent=1 // pred_check_branch
      %27 = sbr.rel (0) target = $region9
    $region8: #{tpu_custom_call.1} parent=1 // pred_region
      %29 = vsyncadd [#allocation6], 0
      %s30 = sshll.u32 %s1, 4
      %s31 = int_to_ptr.hbm [resolvable:$true] %s30
      %s32 = sshll.u32 [#allocation5], 4
      %s33 = int_to_ptr.vmem [resolvable:$true] %s32
      %38 = dma.hbm_to_vmem [thread:$0]  %s31, 1024, %s33, [#allocation6], 64, 64, 4
    $region9: #{tpu_custom_call.1} parent=1 // pred_fallthru
      _
    // Predicated region
    $region10: #{tpu_custom_call.1} parent=1 // pred_check
      _
    $region11: #{tpu_custom_call.1} parent=1 // pred_check_branch
      %40 = sbr.rel (0) target = $region13
    $region12: #{tpu_custom_call.1} parent=1 // pred_region
      _
    $region13: #{tpu_custom_call.1} parent=1 // pred_fallthru
      _
    // Predicated region
    $region14: #{tpu_custom_call.1} parent=1 // pred_check
      _
    $region15: #{tpu_custom_call.1} parent=1 // pred_check_branch
      %42 = sbr.rel (0) target = $region17
    $region16: #{tpu_custom_call.1} parent=1 // pred_region
      %44 = vsyncadd [#allocation6], 0
      %s45 = sshll.u32 %s3, 4
      %s46 = int_to_ptr.hbm [resolvable:$true] %s45
      %s47 = sshll.u32 [#allocation7], 4
      %s48 = int_to_ptr.vmem [resolvable:$true] %s47
      %53 = dma.hbm_to_vmem [thread:$0]  %s46, 1024, %s48, [#allocation6], 64, 64, 4
    $region17: #{tpu_custom_call.1} parent=1 // pred_fallthru
      _
    // Predicated region
    $region18: #{tpu_custom_call.1} parent=1 // pred_check
      _
    $region19: #{tpu_custom_call.1} parent=1 // pred_check_branch
      %55 = sbr.rel (0) target = $region21
    $region20: #{tpu_custom_call.1} parent=1 // pred_region
      _
    $region21: #{tpu_custom_call.1} parent=1 // pred_fallthru
      _
    // Predicated region
    $region22: #{tpu_custom_call.1} parent=1 // pred_check
      _
    $region23: #{tpu_custom_call.1} parent=1 // pred_check_branch
      %57 = sbr.rel (0) target = $region25
    $region24: #{tpu_custom_call.1} parent=1 // pred_region
      %59 = dma.done [#allocation3], 128
    $region25: #{tpu_custom_call.1} parent=1 // pred_fallthru
      _
    // Predicated region
    $region26: #{tpu_custom_call.1} parent=1 // pred_check
      _
    $region27: #{tpu_custom_call.1} parent=1 // pred_check_branch
      %61 = sbr.rel (0) target = $region29
    $region28: #{tpu_custom_call.1} parent=1 // pred_region
      %63 = dma.done [#allocation6], 1024
    $region29: #{tpu_custom_call.1} parent=1 // pred_fallthru
      _
    // Predicated region
    $region30: #{tpu_custom_call.1} parent=1 // pred_check
      _
    $region31: #{tpu_custom_call.1} parent=1 // pred_check_branch
      %65 = sbr.rel (0) target = $region33
    $region32: #{tpu_custom_call.1} parent=1 // pred_region
      %67 = dma.done [#allocation6], 1024
    $region33: #{tpu_custom_call.1} parent=1 // pred_fallthru
      _
    %v68 = vld [vmem:[#allocation2] sm:$0xf]
    %v69 = vld [vmem:[#allocation2 + $0x4] sm:$0xf]
    %v70 = vld [vmem:[#allocation5] sm:$0xf]
    %v71 = vld [vmem:[#allocation5 + $0x4] sm:$0xf]
    %v72 = vld [vmem:[#allocation5 + $0x8] sm:$0xf]
    %v73 = vld [vmem:[#allocation5 + $0xc] sm:$0xf]
    %v74 = vld [vmem:[#allocation5 + $0x10] sm:$0xf]
    %v75 = vld [vmem:[#allocation5 + $0x14] sm:$0xf]
    %v76 = vld [vmem:[#allocation5 + $0x18] sm:$0xf]
    %v77 = vld [vmem:[#allocation5 + $0x1c] sm:$0xf]
    %v78 = vld [vmem:[#allocation5 + $0x20] sm:$0xf]
    %v79 = vld [vmem:[#allocation5 + $0x24] sm:$0xf]
    %v80 = vld [vmem:[#allocation5 + $0x28] sm:$0xf]
    %v81 = vld [vmem:[#allocation5 + $0x2c] sm:$0xf]
    %v82 = vld [vmem:[#allocation5 + $0x30] sm:$0xf]
    %v83 = vld [vmem:[#allocation5 + $0x34] sm:$0xf]
    %v84 = vld [vmem:[#allocation5 + $0x38] sm:$0xf]
    %v85 = vld [vmem:[#allocation5 + $0x3c] sm:$0xf]
    %v86 = vld [vmem:[%s2] sm:$0x1]
    %v88 = vperm.slane %v86, 0
    %v92 = vunpack.c.l.b16 %v68
    %v93 = vunpack.c.l.b16 %v69
    %v94 = vpack.c.b16 %v93, %v92
    %v112 = vunpack.c.l.b16 %v70
    %v113 = vunpack.c.l.b16 %v71
    %v114 = vunpack.c.l.b16 %v72
    %v115 = vunpack.c.l.b16 %v73
    %v116 = vunpack.c.l.b16 %v74
    %v117 = vunpack.c.l.b16 %v75
    %v118 = vunpack.c.l.b16 %v76
    %v119 = vunpack.c.l.b16 %v77
    %v120 = vunpack.c.l.b16 %v78
    %v121 = vunpack.c.l.b16 %v79
    %v122 = vunpack.c.l.b16 %v80
    %v123 = vunpack.c.l.b16 %v81
    %v124 = vunpack.c.l.b16 %v82
    %v125 = vunpack.c.l.b16 %v83
    %v126 = vunpack.c.l.b16 %v84
    %v127 = vunpack.c.l.b16 %v85
    %v128 = vpack.c.b16 %v113, %v112
    %v129 = vpack.c.b16 %v115, %v114
    %v130 = vpack.c.b16 %v117, %v116
    %v131 = vpack.c.b16 %v119, %v118
    %v132 = vpack.c.b16 %v121, %v120
    %v133 = vpack.c.b16 %v123, %v122
    %v134 = vpack.c.b16 %v125, %v124
    %v135 = vpack.c.b16 %v127, %v126
    %144 = vmatpush.bf16.msra.mxu0 %v135
    %145 = vmatpush.bf16.msra.mxu0 %v134
    %146 = vmatpush.bf16.msra.mxu0 %v133
    %147 = vmatpush.bf16.msra.mxu0 %v132
    %148 = vmatpush.bf16.msra.mxu0 %v131
    %149 = vmatpush.bf16.msra.mxu0 %v130
    %150 = vmatpush.bf16.msra.mxu0 %v129
    %151 = vmatpush.bf16.msra.mxu0 %v128
    %152 = vmatmul.bf16.gmra.mxu0 %v94
    %v153 = vpop.f32.mrf.mxu0
    %v154 = vadd.f32 %v88, %v153
    %v155 = vpop.f32.mrf.mxu0
    %v156 = vadd.f32 %v88, %v155
    %157 = vdwg.mxu0
    %v158 = vmax.f32 %v154, 0.0
    %v159 = vmax.f32 %v156, 0.0
    %v160 = vpack.c.bf16 %v159, %v158
    %v161 = vld [vmem:[#allocation7] sm:$0xf]
    %v162 = vld [vmem:[#allocation7 + $0x4] sm:$0xf]
    %v163 = vld [vmem:[#allocation7 + $0x8] sm:$0xf]
    %v164 = vld [vmem:[#allocation7 + $0xc] sm:$0xf]
    %v165 = vld [vmem:[#allocation7 + $0x10] sm:$0xf]
    %v166 = vld [vmem:[#allocation7 + $0x14] sm:$0xf]
    %v167 = vld [vmem:[#allocation7 + $0x18] sm:$0xf]
    %v168 = vld [vmem:[#allocation7 + $0x1c] sm:$0xf]
    %v169 = vld [vmem:[#allocation7 + $0x20] sm:$0xf]
    %v170 = vld [vmem:[#allocation7 + $0x24] sm:$0xf]
    %v171 = vld [vmem:[#allocation7 + $0x28] sm:$0xf]
    %v172 = vld [vmem:[#allocation7 + $0x2c] sm:$0xf]
    %v173 = vld [vmem:[#allocation7 + $0x30] sm:$0xf]
    %v174 = vld [vmem:[#allocation7 + $0x34] sm:$0xf]
    %v175 = vld [vmem:[#allocation7 + $0x38] sm:$0xf]
    %v176 = vld [vmem:[#allocation7 + $0x3c] sm:$0xf]
    %v177 = vld [vmem:[%s4] sm:$0x1]
    %v179 = vperm.slane %v177, 0
    %v197 = vunpack.c.l.b16 %v161
    %v198 = vunpack.c.l.b16 %v162
    %v199 = vunpack.c.l.b16 %v163
    %v200 = vunpack.c.l.b16 %v164
    %v201 = vunpack.c.l.b16 %v165
    %v202 = vunpack.c.l.b16 %v166
    %v203 = vunpack.c.l.b16 %v167
    %v204 = vunpack.c.l.b16 %v168
    %v205 = vunpack.c.l.b16 %v169
    %v206 = vunpack.c.l.b16 %v170
    %v207 = vunpack.c.l.b16 %v171
    %v208 = vunpack.c.l.b16 %v172
    %v209 = vunpack.c.l.b16 %v173
    %v210 = vunpack.c.l.b16 %v174
    %v211 = vunpack.c.l.b16 %v175
    %v212 = vunpack.c.l.b16 %v176
    %v213 = vpack.c.b16 %v198, %v197
    %v214 = vpack.c.b16 %v200, %v199
    %v215 = vpack.c.b16 %v202, %v201
    %v216 = vpack.c.b16 %v204, %v203
    %v217 = vpack.c.b16 %v206, %v205
    %v218 = vpack.c.b16 %v208, %v207
    %v219 = vpack.c.b16 %v210, %v209
    %v220 = vpack.c.b16 %v212, %v211
    %229 = vmatpush.bf16.msra.mxu0 %v220
    %230 = vmatpush.bf16.msra.mxu0 %v219
    %231 = vmatpush.bf16.msra.mxu0 %v218
    %232 = vmatpush.bf16.msra.mxu0 %v217
    %233 = vmatpush.bf16.msra.mxu0 %v216
    %234 = vmatpush.bf16.msra.mxu0 %v215
    %235 = vmatpush.bf16.msra.mxu0 %v214
    %236 = vmatpush.bf16.msra.mxu0 %v213
    %237 = vmatmul.bf16.gmra.mxu0 %v160
    %v238 = vpop.f32.mrf.mxu0
    %v239 = vadd.f32 %v179, %v238
    %v240 = vpop.f32.mrf.mxu0
    %v241 = vadd.f32 %v179, %v240
    %242 = vdwg.mxu0
    %v243 = vmax.f32 %v239, 0.0
    %v244 = vmax.f32 %v241, 0.0
    %v245 = vpack.c.bf16 %v243, %v243
    %v246 = vpack.c.bf16 %v244, %v244
    %247 = vst [vmem:[#allocation8] sm:$0xf] %v245
    %248 = vst [vmem:[#allocation8 + $0x4] sm:$0xf] %v246
    // Predicated region
    $region34: #{tpu_custom_call.1} parent=1 // pred_check
      _
    $region35: #{tpu_custom_call.1} parent=1 // pred_check_branch
      %250 = sbr.rel (0) target = $region37
    $region36: #{tpu_custom_call.1} parent=1 // pred_region
      %252 = vsyncadd [#allocation4], 0
      %s253 = sshll.u32 [#allocation8], 4
      %s254 = int_to_ptr.vmem [resolvable:$true] %s253
      %s255 = sshll.u32 %s5, 4
      %s256 = int_to_ptr.hbm [resolvable:$true] %s255
      %261 = dma.vmem_to_hbm [thread:$0]  %s254, 128, %s256, [#allocation4], 64, 64, 4
    $region37: #{tpu_custom_call.1} parent=1 // pred_fallthru
      _
    // Predicated region
    $region38: #{tpu_custom_call.1} parent=1 // pred_check
      _
    $region39: #{tpu_custom_call.1} parent=1 // pred_check_branch
      %263 = sbr.rel (0) target = $region41
    $region40: #{tpu_custom_call.1} parent=1 // pred_region
      %265 = dma.done [#allocation4], 128
    $region41: #{tpu_custom_call.1} parent=1 // pred_fallthru
      _
    %266 = vsyncpa [#allocation3], 1
    %267 = vsyncpa [#allocation6], 1
    %268 = vsyncpa [#allocation4], 1

</llo_original>
